<compile_context>
chip_gen: v5e
topology: v5e:2x2
jax: 0.10.0
libtpu: 0.0.40
codegen_flags: <defaults>
</compile_context>

<pallas_src>
import numpy as np
import jax
import jax.numpy as jnp
from jax import lax
from jax.experimental import pallas as pl
from jax.experimental.pallas import tpu as pltpu


_ROW_TILE_CAP = 512  # ~85% of HBM roofline measured for streaming kernels


def _round_up(x, m):
    return ((x + m - 1) // m) * m


def _padded_rows(m):
    """Pad a row count so it is either a single full tile or a multiple of the cap."""
    if m <= _ROW_TILE_CAP:
        return _round_up(m, 8)
    return _round_up(m, _ROW_TILE_CAP)


# ----------------------------------------------------------------------------
# Kernel 1: batched per-session projection  out[s] = x[s] @ W[s] + b[s]
#   One launch for all sessions (normalize / unnormalize already folded into W, b).
# ----------------------------------------------------------------------------
def _proj_kernel(x_ref, w_ref, b_ref, o_ref):
    o_ref[...] = (
        jnp.dot(x_ref[...], w_ref[...], preferred_element_type=jnp.float32)
        + b_ref[...]
    ).astype(o_ref.dtype)


def batched_projection(x_stack, w_stack, b_stack):
    """x_stack: (S, M, K); w_stack: (S, K, N); b_stack: (S, 1, N) -> (S, M, N)."""
    S, M, K = x_stack.shape
    N = w_stack.shape[2]
    tm = M if M <= _ROW_TILE_CAP else _ROW_TILE_CAP
    assert M % tm == 0 and (tm == M or tm % 8 == 0)
    return pl.pallas_call(
        _proj_kernel,
        out_shape=jax.ShapeDtypeStruct((S, M, N), x_stack.dtype),
        grid_spec=pltpu.PrefetchScalarGridSpec(
            num_scalar_prefetch=0,
            grid=(S, M // tm),
            in_specs=[
                pl.BlockSpec((None, tm, K), lambda s, i: (s, i, 0)),
                pl.BlockSpec((None, K, N), lambda s, i: (s, 0, 0)),
                pl.BlockSpec((None, 1, N), lambda s, i: (s, 0, 0)),
            ],
            out_specs=pl.BlockSpec((None, tm, N), lambda s, i: (s, i, 0)),
        ),
        compiler_params=pltpu.CompilerParams(
            dimension_semantics=("parallel", "parallel")
        ),
    )(x_stack, w_stack, b_stack)


# ----------------------------------------------------------------------------
# Kernel 2: chain-parallel RNN rollout, tiled over the chain axis.
#   Chain c starts at z[start_rows[c]] (scalar-prefetched -> gather fused into the
#   input DMA).  W_hh^T / b_hh are VMEM-resident via constant index maps.  Each
#   grid step runs num_steps sequential tanh-matmul steps on its (B, H) state.
# ----------------------------------------------------------------------------
def rnn_chain_rollout(z, start_rows, w_hh_t, b_hh_row, num_steps, unroll):
    L, B, H = z.shape
    NC = int(start_rows.shape[0])

    def kernel(starts_ref, z_ref, w_ref, b_ref, out_ref):
        del starts_ref  # consumed by the index_map only
        w = w_ref[...]
        b_full = jnp.broadcast_to(b_ref[...], (B, H))  # hoisted: one broadcast total

        def body(j, h):
            h_new = jnp.tanh(
                jnp.dot(h, w, preferred_element_type=jnp.float32) + b_full
            )
            out_ref[j] = h_new.astype(out_ref.dtype)
            return h_new

        lax.fori_loop(0, num_steps, body, z_ref[...].astype(jnp.float32),
                      unroll=unroll)

    return pl.pallas_call(
        kernel,
        out_shape=jax.ShapeDtypeStruct((NC, num_steps, B, H), z.dtype),
        grid_spec=pltpu.PrefetchScalarGridSpec(
            num_scalar_prefetch=1,
            grid=(NC,),
            in_specs=[
                pl.BlockSpec((None, B, H), lambda c, starts: (starts[c], 0, 0)),
                pl.BlockSpec((H, H), lambda c, starts: (0, 0)),
                pl.BlockSpec((1, H), lambda c, starts: (0, 0)),
            ],
            out_specs=pl.BlockSpec(
                (None, num_steps, B, H), lambda c, starts: (c, 0, 0, 0)
            ),
        ),
        compiler_params=pltpu.CompilerParams(dimension_semantics=("parallel",)),
    )(start_rows, z, w_hh_t, b_hh_row)


# ----------------------------------------------------------------------------
# One-time parameter preparation (float64 numpy so the folding loses no precision):
#   obs -> latent : z = ((x - mu)/std - b) @ Wp^T  ==  x @ A + c
#   latent -> obs : x = (z @ W^T + b) * std + mu   ==  z @ G + g
# All sessions are zero-padded to D_max and stacked for the batched kernel.
# ----------------------------------------------------------------------------
def prepare_params(params):
    W_hh = np.asarray(params["W_hh"], np.float64)
    b_hh = np.asarray(params["b_hh"], np.float64)
    H = W_hh.shape[0]
    sessions = params["sessions"]
    S = len(sessions)
    d_sizes = [int(np.asarray(sp["W"]).shape[0]) for sp in sessions]
    D_max = max(d_sizes)

    A = np.zeros((S, D_max, H), np.float64)
    c_in = np.zeros((S, 1, H), np.float64)
    G = np.zeros((S, H, D_max), np.float64)
    g_out = np.zeros((S, 1, D_max), np.float64)
    for i, sp in enumerate(sessions):
        D = d_sizes[i]
        W = np.asarray(sp["W"], np.float64)        # (D, H)
        b = np.asarray(sp["b"], np.float64)        # (D,)
        mu = np.asarray(sp["mu"], np.float64)      # (D,)
        std = np.asarray(sp["std"], np.float64)    # (D,)
        Wp = np.asarray(sp["W_pinv"], np.float64)  # (H, D)
        inv_std = 1.0 / std
        A[i, :D, :] = Wp.T * inv_std[:, None]
        c_in[i, 0, :] = -(mu * inv_std + b) @ Wp.T
        G[i, :, :D] = W.T * std[None, :]
        g_out[i, 0, :D] = b * std + mu
    return {
        "A": jnp.asarray(A, jnp.float32),
        "c_in": jnp.asarray(c_in, jnp.float32),
        "G": jnp.asarray(G, jnp.float32),
        "g_out": jnp.asarray(g_out, jnp.float32),
        "W_hh_T": jnp.asarray(W_hh.T, jnp.float32),
        "b_hh": jnp.asarray(b_hh.reshape(1, H), jnp.float32),
        "d_sizes": d_sizes,
        "H": H,
    }


# ----------------------------------------------------------------------------
# Full LatentModel.forward
# ----------------------------------------------------------------------------
def latent_model_forward(xs, prep, tf_interval, pred_step):
    """xs: list of (L, B_i, D_i) float32 arrays (time-major, like the PyTorch module)."""
    assert tf_interval >= 1
    H = prep["H"]
    d_sizes = prep["d_sizes"]
    S = len(xs)
    L = int(xs[0].shape[0])
    bsz = [int(x.shape[1]) for x in xs]
    Lm1 = L - 1
    assert Lm1 + pred_step > 0, "empty output: need L > 1 or pred_step > 0"

    # ---- obs -> latent: one batched kernel over all sessions ----------------
    D_max = prep["A"].shape[1]
    rows_in = [L * b for b in bsz]
    M_in = _padded_rows(max(rows_in))
    x_stack = jnp.zeros((S, M_in, D_max), jnp.float32)
    for i, x in enumerate(xs):
        x_stack = x_stack.at[i, :rows_in[i], :d_sizes[i]].set(
            x.reshape(rows_in[i], d_sizes[i])
        )
    z_stack = batched_projection(x_stack, prep["A"], prep["c_in"])  # (S, M_in, H)
    z = jnp.concatenate(
        [z_stack[i, :rows_in[i]].reshape(L, bsz[i], H) for i in range(S)], axis=1
    )  # (L, B_total, H)
    B = z.shape[1]

    # ---- chain-parallel recurrent rollout ------------------------------------
    # Teacher-forcing chain c starts at z[c*tf_interval] and contributes
    # min(tf_interval, L-1 - c*tf_interval) outputs; the prediction tail starts at
    # z[L-1] and contributes pred_step outputs.  All chains are independent, so the
    # sequential dependency is only max(tf_interval, pred_step) steps.
    tf_starts = list(range(0, Lm1, tf_interval))
    chain_lens = [min(tf_interval, Lm1 - s) for s in tf_starts]
    start_rows = tf_starts + [Lm1]
    num_steps = max(chain_lens + [pred_step])
    NC = len(start_rows)
    starts_arr = jnp.asarray(start_rows, dtype=jnp.int32)
    unroll = True if num_steps <= 16 else 8
    # TODO(synk): if |pred_step - tf_interval| is large at production sizes, run the
    #             prediction tail as a separate tiny call to avoid over-rolled steps.
    states = rnn_chain_rollout(
        z, starts_arr, prep["W_hh_T"], prep["b_hh"], num_steps, unroll
    )  # (NC, num_steps, B, H)

    # Reassemble into sequential time order (static slices, cheap XLA ops).
    pieces = [states[c, :clen] for c, clen in enumerate(chain_lens)]
    if pred_step > 0:
        pieces.append(states[NC - 1, :pred_step])
    z_out = jnp.concatenate(pieces, axis=0)  # (L-1+pred_step, B, H)
    T_out = int(z_out.shape[0])

    # ---- latent -> obs: one batched kernel over all sessions ----------------
    rows_out = [T_out * b for b in bsz]
    M_out = _padded_rows(max(rows_out))
    z_pad = jnp.zeros((S, M_out, H), jnp.float32)
    off = 0
    for i, b in enumerate(bsz):
        z_pad = z_pad.at[i, :rows_out[i], :].set(
            z_out[:, off:off + b, :].reshape(rows_out[i], H)
        )
        off += b
    x_out = batched_projection(z_pad, prep["G"], prep["g_out"])  # (S, M_out, D_max)

    outs = []
    for i in range(S):
        outs.append(
            x_out[i, :rows_out[i], :d_sizes[i]].reshape(T_out, bsz[i], d_sizes[i])
        )
    return outs


# ----------------------------------------------------------------------------
# Pure-JAX reference (high-precision matmuls) for correctness checking
# ----------------------------------------------------------------------------
def reference_forward(xs, params, tf_interval, pred_step):
    HIGH = jax.lax.Precision.HIGHEST
    zs = []
    for x, sp in zip(xs, params["sessions"]):
        xn = (x - sp["mu"]) / sp["std"] - sp["b"]
        zs.append(jnp.einsum("lbd,hd->lbh", xn, sp["W_pinv"], precision=HIGH))
    z = jnp.concatenate(zs, axis=1)
    L = z.shape[0]
    W_hh, b_hh = params["W_hh"], params["b_hh"]
    outs = []
    last = z[0]
    for step in range(L - 1):
        if step % tf_interval == 0:
            last = z[step]
        last = jnp.tanh(jnp.dot(last, W_hh.T, precision=HIGH) + b_hh)
        outs.append(last)
    last = z[-1]
    for _ in range(pred_step):
        last = jnp.tanh(jnp.dot(last, W_hh.T, precision=HIGH) + b_hh)
        outs.append(last)
    zo = jnp.stack(outs)
    res = []
    off = 0
    for x, sp in zip(xs, params["sessions"]):
        b = x.shape[1]
        zs_ = zo[:, off:off + b, :]
        off += b
        y = jnp.einsum("lbh,dh->lbd", zs_, sp["W"], precision=HIGH) + sp["b"]
        res.append(y * sp["std"] + sp["mu"])
    return res


# ----------------------------------------------------------------------------
# Deterministic parameter / input construction and test
# ----------------------------------------------------------------------------
def make_params(key, hidden_size, input_sizes):
    sessions = []
    for D in input_sizes:
        k1, k2, k3, k4, key = jax.random.split(key, 5)
        W = jax.random.normal(k1, (D, hidden_size), jnp.float32) * 0.3
        b = jax.random.normal(k2, (D,), jnp.float32) * 0.1
        mu = jax.random.normal(k3, (D,), jnp.float32) * 0.5
        std = 0.5 + jax.random.uniform(k4, (D,), jnp.float32)
        W_pinv = jnp.asarray(np.linalg.pinv(np.asarray(W)), jnp.float32)  # (H, D)
        sessions.append({"W": W, "b": b, "mu": mu, "std": std, "W_pinv": W_pinv})
    k1, k2, key = jax.random.split(key, 3)
    W_hh = jax.random.normal(k1, (hidden_size, hidden_size), jnp.float32) * (
        0.3 / np.sqrt(hidden_size)
    )
    b_hh = jax.random.normal(k2, (hidden_size,), jnp.float32) * 0.05
    return {"sessions": sessions, "W_hh": W_hh, "b_hh": b_hh}


if __name__ == "__main__":
    key = jax.random.PRNGKey(0)

    hidden_size = 32
    input_sizes = [12, 20]       # per-session observation dims (flattened config)
    batch_sizes = [2, 3]
    L = 8                        # sequence length
    tf_interval = 2
    pred_step = 3

    kp, kx = jax.random.split(key)
    params = make_params(kp, hidden_size, input_sizes)
    prep = prepare_params(params)   # one-time weight folding / stacking

    xs = []
    for D, B in zip(input_sizes, batch_sizes):
        kx, sub = jax.random.split(kx)
        xs.append(jax.random.normal(sub, (L, B, D), jnp.float32))

    out = latent_model_forward(xs, prep, tf_interval, pred_step)
    out = [jax.block_until_ready(o) for o in out]

    ref = reference_forward(xs, params, tf_interval, pred_step)
    ref = [jax.block_until_ready(r) for r in ref]

    for o, r in zip(out, ref):
        assert o.shape == r.shape, (o.shape, r.shape)
        max_err = float(jnp.max(jnp.abs(o - r)))
        assert max_err < 1e-4, f"max abs error {max_err}"

    print("KERNEL_OK")
</pallas_src>

<mosaic_0001>
module attributes {stable_mosaic.version = 11 : i64} {
  func.func @_proj_kernel(%arg0: i32, %arg1: i32, %arg2: memref<1x24x20xf32, #tpu.memory_space<vmem>>, %arg3: memref<1x20x32xf32, #tpu.memory_space<vmem>>, %arg4: memref<1x1x32xf32, #tpu.memory_space<vmem>>, %arg5: memref<1x24x32xf32, #tpu.memory_space<vmem>>) attributes {dimension_semantics = [#tpu.dimension_semantics<parallel>, #tpu.dimension_semantics<parallel>], iteration_bounds = array<i64: 2, 1>, scalar_prefetch = 0 : i64, scratch_operands = 0 : i64, tpu.core_type = #tpu.core_type<tc>, window_params = [{transform_indices = @transform_0, window_bounds = array<i64: 1, 24, 20>}, {transform_indices = @transform_1, window_bounds = array<i64: 1, 20, 32>}, {transform_indices = @transform_2, window_bounds = array<i64: 1, 1, 32>}, {transform_indices = @transform_3, window_bounds = array<i64: 1, 24, 32>}]} {
    %c0 = arith.constant 0 : index
    %c0_0 = arith.constant 0 : index
    %c0_1 = arith.constant 0 : index
    %0 = vector.load %arg2[%c0, %c0_0, %c0_1] : memref<1x24x20xf32, #tpu.memory_space<vmem>>, vector<1x24x20xf32>
    %1 = vector.shape_cast %0 : vector<1x24x20xf32> to vector<24x20xf32>
    %c0_2 = arith.constant 0 : index
    %c0_3 = arith.constant 0 : index
    %c0_4 = arith.constant 0 : index
    %2 = vector.load %arg3[%c0_2, %c0_3, %c0_4] : memref<1x20x32xf32, #tpu.memory_space<vmem>>, vector<1x20x32xf32>
    %3 = vector.shape_cast %2 : vector<1x20x32xf32> to vector<20x32xf32>
    %cst = arith.constant dense<0.000000e+00> : vector<24x32xf32>
    %4 = tpu.matmul %1, %3, %cst {dimension_numbers = #tpu.dot_dimension_numbers<[1], [0], [0], [1], [0, 0, 1, 1], [], []>} : vector<24x20xf32>, vector<20x32xf32>, vector<24x32xf32> -> vector<24x32xf32>
    %c0_5 = arith.constant 0 : index
    %c0_6 = arith.constant 0 : index
    %c0_7 = arith.constant 0 : index
    %5 = vector.load %arg4[%c0_5, %c0_6, %c0_7] : memref<1x1x32xf32, #tpu.memory_space<vmem>>, vector<1x1x32xf32>
    %6 = vector.shape_cast %5 : vector<1x1x32xf32> to vector<1x32xf32>
    %7 = vector.broadcast %6 : vector<1x32xf32> to vector<24x32xf32>
    %8 = arith.addf %4, %7 : vector<24x32xf32>
    %c0_8 = arith.constant 0 : index
    %c0_9 = arith.constant 0 : index
    %c0_10 = arith.constant 0 : index
    %9 = vector.load %arg5[%c0_8, %c0_9, %c0_10] : memref<1x24x32xf32, #tpu.memory_space<vmem>>, vector<1x24x32xf32>
    %10 = vector.shape_cast %9 : vector<1x24x32xf32> to vector<24x32xf32>
    %11 = vector.shape_cast %8 : vector<24x32xf32> to vector<1x24x32xf32>
    tpu.vector_store %arg5[%c0_8, %c0_9, %c0_10], %11 {strides = array<i32>} : memref<1x24x32xf32, #tpu.memory_space<vmem>>, vector<1x24x32xf32>,
    return
  }
  func.func @transform_0(%arg0: i32, %arg1: i32) -> (i32, i32, i32) {
    %c0_i32 = arith.constant 0 : i32
    %c0_i32_0 = arith.constant 0 : i32
    return %arg0, %arg1, %c0_i32 : i32, i32, i32
  }
  func.func @transform_1(%arg0: i32, %arg1: i32) -> (i32, i32, i32) {
    %c0_i32 = arith.constant 0 : i32
    %c0_i32_0 = arith.constant 0 : i32
    %c0_i32_1 = arith.constant 0 : i32
    return %arg0, %c0_i32, %c0_i32_0 : i32, i32, i32
  }
  func.func @transform_2(%arg0: i32, %arg1: i32) -> (i32, i32, i32) {
    %c0_i32 = arith.constant 0 : i32
    %c0_i32_0 = arith.constant 0 : i32
    %c0_i32_1 = arith.constant 0 : i32
    return %arg0, %c0_i32, %c0_i32_0 : i32, i32, i32
  }
  func.func @transform_3(%arg0: i32, %arg1: i32) -> (i32, i32, i32) {
    %c0_i32 = arith.constant 0 : i32
    %c0_i32_0 = arith.constant 0 : i32
    return %arg0, %arg1, %c0_i32 : i32, i32, i32
  }
}

</mosaic_0001>

<llo_original>
// kernel: tpu_custom_call.1
$region0: #{tpu_custom_call.1}
  #allocation0 [shape = 'u32[]', space=smem, size = 0x4, offset = 0x4, fixed_abs, tag = 'smem constant byte address 0x4 - core index']
  #allocation1 [shape = 'u32[72,128]{1,0:T(1,128)}', space=vmem, size = 0x9000, scoped, tag = 'internal scratch']
  %s0 = inlined_call_operand.vmem [shape: f32[2,24,20], index: 0, kind: input, shape index: {}]
  %s1 = inlined_call_operand.vmem [shape: f32[2,20,32], index: 1, kind: input, shape index: {}]
  %s2 = inlined_call_operand.vmem [shape: f32[2,1,32], index: 2, kind: input, shape index: {}]
  %s3 = inlined_call_operand.hbm [shape: f32[2,24,32], index: 3, kind: output, shape index: {}]
  %s4 = sld [smem:[#allocation0]]
  $region45: #{tpu_custom_call.1} parent=0
    _
  %s6 = ssub.s32 1, %s4
  %s7 = scalar_select 0, %s6, %s4
  $region1: #{tpu_custom_call.1} parent=0
    #allocation2 [shape = 'u8[24576]{0}', space=vmem, size = 0x6000, scoped, tag = 'output window, operand 0']
    #allocation3 [shape = 's32[2]{0}', space=sflag, size = 0x8, scoped, tag = 'scoped memory for tpu_custom_call.1']
    %8 = vsyncpa [#allocation3], 0
    %s9 = scalar_lea.sflag [#allocation3], 1
    %10 = vsyncpa %s9, 0
    loop: start=0, step=1, limit=4
    $region2: #{tpu_custom_call.1} parent=1 // loop_pre_header
      _
    $region3: #{tpu_custom_call.1} parent=1 // loop_header
      %s12 = sphi 0, %s16
      %p13 = scmp.ge.s32.totalorder %s12, 4
      %s19 = sphi 0, %s31
      %s20 = sphi 0, %s27
      %s21 = sphi 0, %s19
      %s22 = sphi 0, %s20
      %s23 = sphi 0, %s21
      %s24 = sphi 0, %s22
      %s36 = sphi 0, %s38
      %s39 = sphi 0, %s36
      %s40 = sphi 0, %s39
      %s56 = sphi 0, %s40
      %s62 = sphi 0, %s64
      %s65 = sphi 0, %s62
      %s66 = sphi 0, %s65
      %s82 = sphi 0, %s66
      %s88 = sphi 0, %s90
      %s91 = sphi 0, %s88
      %s92 = sphi 0, %s91
      %s108 = sphi 0, %s92
      %s116 = sphi 0, %s118
      %s119 = sphi 0, %s116
      %s120 = sphi 0, %s119
      %s136 = sphi 0, %s120
    $region4: #{tpu_custom_call.1} parent=1 // loop_header_branch
      %15 = sbr.rel (%p13) target = $region8
    $region5: #{tpu_custom_call.1} parent=1 // loop_body
      %s17 = ssub.s32 %s12, 1
      %s18 = ssub.s32 %s12, 2
      %s25 = sadd.s32 1, %s20
      %p26 = scmp.ge.s32.totalorder %s25, 1
      %s27 = scalar_select %p26, 0, %s25
      %s28 = sadd.s32 1, %s19
      %s29 = scalar_select %p26, %s28, %s19
      %p30 = scmp.ge.s32.totalorder %s29, 2
      %s31 = scalar_select %p30, 0, %s29
      %s32 = ssub.s32 %s19, %s31
      %s33 = ssub.s32 %s20, %s27
      %s34 = sor.u32 %s32, %s33
      %p35 = scmp.eq.s32.totalorder %s34, 0
      %s37 = sadd.s32 %s36, 1
      %s38 = scalar_select %p35, %s36, %s37
      %p41 = pneg %p35
      %p42 = scmp.eq.s32.totalorder %s12, 1
      %p43 = por %p41, %p42
      %p44 = scmp.ne.s32.totalorder %s36, %s39
      %p45 = scmp.eq.s32.totalorder %s12, 0
      %p46 = por %p44, %p45
      %p47 = scmp.ne.s32.totalorder %s36, %s39
      %p48 = scmp.eq.s32.totalorder %s17, 1
      %p49 = por %p47, %p48
      %p50 = scmp.ne.s32.totalorder %s39, %s40
      %p51 = scmp.eq.s32.totalorder %s17, 0
      %p52 = por %p50, %p51
      %p53 = scmp.ne.s32.totalorder %s39, %s40
      %p54 = scmp.eq.s32.totalorder %s18, 1
      %p55 = por %p53, %p54
      %p57 = scmp.ne.s32.totalorder %s40, %s56
      %p58 = scmp.eq.s32.totalorder %s18, 0
      %p59 = por %p57, %p58
      %s60 = ssub.s32 %s19, %s31
      %p61 = scmp.eq.s32.totalorder %s60, 0
      %s63 = sadd.s32 %s62, 1
      %s64 = scalar_select %p61, %s62, %s63
      %p67 = pneg %p61
      %p68 = scmp.eq.s32.totalorder %s12, 1
      %p69 = por %p67, %p68
      %p70 = scmp.ne.s32.totalorder %s62, %s65
      %p71 = scmp.eq.s32.totalorder %s12, 0
      %p72 = por %p70, %p71
      %p73 = scmp.ne.s32.totalorder %s62, %s65
      %p74 = scmp.eq.s32.totalorder %s17, 1
      %p75 = por %p73, %p74
      %p76 = scmp.ne.s32.totalorder %s65, %s66
      %p77 = scmp.eq.s32.totalorder %s17, 0
      %p78 = por %p76, %p77
      %p79 = scmp.ne.s32.totalorder %s65, %s66
      %p80 = scmp.eq.s32.totalorder %s18, 1
      %p81 = por %p79, %p80
      %p83 = scmp.ne.s32.totalorder %s66, %s82
      %p84 = scmp.eq.s32.totalorder %s18, 0
      %p85 = por %p83, %p84
      %s86 = ssub.s32 %s19, %s31
      %p87 = scmp.eq.s32.totalorder %s86, 0
      %s89 = sadd.s32 %s88, 1
      %s90 = scalar_select %p87, %s88, %s89
      %p93 = pneg %p87
      %p94 = scmp.eq.s32.totalorder %s12, 1
      %p95 = por %p93, %p94
      %p96 = scmp.ne.s32.totalorder %s88, %s91
      %p97 = scmp.eq.s32.totalorder %s12, 0
      %p98 = por %p96, %p97
      %p99 = scmp.ne.s32.totalorder %s88, %s91
      %p100 = scmp.eq.s32.totalorder %s17, 1
      %p101 = por %p99, %p100
      %p102 = scmp.ne.s32.totalorder %s91, %s92
      %p103 = scmp.eq.s32.totalorder %s17, 0
      %p104 = por %p102, %p103
      %p105 = scmp.ne.s32.totalorder %s91, %s92
      %p106 = scmp.eq.s32.totalorder %s18, 1
      %p107 = por %p105, %p106
      %p109 = scmp.ne.s32.totalorder %s92, %s108
      %p110 = scmp.eq.s32.totalorder %s18, 0
      %p111 = por %p109, %p110
      %s112 = ssub.s32 %s19, %s31
      %s113 = ssub.s32 %s20, %s27
      %s114 = sor.u32 %s112, %s113
      %p115 = scmp.eq.s32.totalorder %s114, 0
      %s117 = sadd.s32 %s116, 1
      %s118 = scalar_select %p115, %s116, %s117
      %p121 = pneg %p115
      %p122 = scmp.eq.s32.totalorder %s12, 1
      %p123 = por %p121, %p122
      %p124 = scmp.ne.s32.totalorder %s116, %s119
      %p125 = scmp.eq.s32.totalorder %s12, 0
      %p126 = por %p124, %p125
      %p127 = scmp.ne.s32.totalorder %s116, %s119
      %p128 = scmp.eq.s32.totalorder %s17, 1
      %p129 = por %p127, %p128
      %p130 = scmp.ne.s32.totalorder %s119, %s120
      %p131 = scmp.eq.s32.totalorder %s17, 0
      %p132 = por %p130, %p131
      %p133 = scmp.ne.s32.totalorder %s119, %s120
      %p134 = scmp.eq.s32.totalorder %s18, 1
      %p135 = por %p133, %p134
      %p137 = scmp.ne.s32.totalorder %s120, %s136
      %p138 = scmp.eq.s32.totalorder %s18, 0
      %p139 = por %p137, %p138
      %p140 = scmp.le.s32.totalorder 1, %s12
      %p141 = scmp.lt.s32.totalorder %s12, 3
      %p142 = pnand %p140, %p141
      %p143 = pneg %p142
      // Predicated region
      $region9: #{tpu_custom_call.1} parent=5 // pred_check
        _
      $region10: #{tpu_custom_call.1} parent=5 // pred_check_branch
        %145 = sbr.rel (%p142) target = $region12
      $region11: #{tpu_custom_call.1} parent=5 // pred_region
        %s146 = ssub.s32 %s12, 1
      $region12: #{tpu_custom_call.1} parent=5 // pred_fallthru
        _
      %p147 = scmp.lt.s32.totalorder %s12, 2
      // Predicated region
      $region13: #{tpu_custom_call.1} parent=5 // pred_check
        %p148 = pneg %p147
      $region14: #{tpu_custom_call.1} parent=5 // pred_check_branch
        %150 = sbr.rel (%p148) target = $region16
      $region15: #{tpu_custom_call.1} parent=5 // pred_region
        // Predicated region
        $region17: #{tpu_custom_call.1} parent=15 // pred_check
          %p151 = pneg %p46
        $region18: #{tpu_custom_call.1} parent=15 // pred_check_branch
          %153 = sbr.rel (%p151) target = $region20
        $region19: #{tpu_custom_call.1} parent=15 // pred_region
          %s154 = smul.u32 3, %s20
          %p155 = scmp.lt.s32.totalorder %s19, 1
          %s156 = scalar_select %p155, %s19, 1
          %p157 = scmp.lt.s32.totalorder %s154, 2
          %s158 = scalar_select %p157, %s154, 2
          %s159 = smul.addr %s156, 3
          %s160 = sadd.s32 %s158, %s159
          %s161 = smul.addr %s160, 8
          %s162 = scalar_lea.vmem %s0, %s161
          %s163 = smul.u32 3, %s20
        $region20: #{tpu_custom_call.1} parent=15 // pred_fallthru
          _
        // Predicated region
        $region21: #{tpu_custom_call.1} parent=15 // pred_check
          %p164 = pneg %p72
        $region22: #{tpu_custom_call.1} parent=15 // pred_check_branch
          %166 = sbr.rel (%p164) target = $region24
        $region23: #{tpu_custom_call.1} parent=15 // pred_region
          %p167 = scmp.lt.s32.totalorder %s19, 1
          %s168 = scalar_select %p167, %s19, 1
          %s169 = smul.addr %s168, 3
          %s170 = smul.addr %s169, 8
          %s171 = scalar_lea.vmem %s1, %s170
        $region24: #{tpu_custom_call.1} parent=15 // pred_fallthru
          _
        // Predicated region
        $region25: #{tpu_custom_call.1} parent=15 // pred_check
          %p172 = pneg %p98
        $region26: #{tpu_custom_call.1} parent=15 // pred_check_branch
          %174 = sbr.rel (%p172) target = $region28
        $region27: #{tpu_custom_call.1} parent=15 // pred_region
          %p175 = scmp.lt.s32.totalorder %s19, 1
          %s176 = scalar_select %p175, %s19, 1
          %s177 = scalar_lea.vmem %s2, %s176
        $region28: #{tpu_custom_call.1} parent=15 // pred_fallthru
          _
      $region16: #{tpu_custom_call.1} parent=5 // pred_fallthru
        _
      %p178 = scmp.le.s32.totalorder 1, %s12
      %p179 = scmp.lt.s32.totalorder %s12, 3
      %p180 = pnand %p178, %p179
      %p181 = pneg %p180
      // Predicated region
      $region29: #{tpu_custom_call.1} parent=5 // pred_check
        _
      $region30: #{tpu_custom_call.1} parent=5 // pred_check_branch
        %183 = sbr.rel (%p180) target = $region32
      $region31: #{tpu_custom_call.1} parent=5 // pred_region
        %s184 = ssub.s32 %s12, 1
        %s185 = smul.u32 3, %s22
        %p186 = scmp.lt.s32.totalorder %s21, 1
        %s187 = scalar_select %p186, %s21, 1
        %p188 = scmp.lt.s32.totalorder %s185, 2
        %s189 = scalar_select %p188, %s185, 2
        %s190 = smul.addr %s187, 3
        %s191 = sadd.s32 %s189, %s190
        %s192 = smul.addr %s191, 8
        %s193 = scalar_lea.vmem %s0, %s192
        %p194 = pneg %p52
        %p195 = pneg %p49
        %p196 = scmp.lt.s32.totalorder %s21, 1
        %s197 = scalar_select %p196, %s21, 1
        %s198 = smul.addr %s197, 3
        %s199 = smul.addr %s198, 8
        %s200 = scalar_lea.vmem %s1, %s199
        %p201 = pneg %p78
        %p202 = pneg %p75
        %p203 = scmp.lt.s32.totalorder %s21, 1
        %s204 = scalar_select %p203, %s21, 1
        %s205 = scalar_lea.vmem %s2, %s204
        %p206 = pneg %p104
        %p207 = pneg %p101
        %p208 = pneg %p132
        %p209 = pneg %p129
        %s210 = sand.u32 %s119, 1
        %s211 = scalar_lea.sflag [#allocation3], %s210
        %s212 = sand.u32 %s119, 1
        %s213 = smul.addr %s212, 24
        %s214 = scalar_lea.vmem [#allocation2], %s213
        %s215 = smul.u32 3, %s22
        %p216 = scmp.lt.s32.totalorder %s21, 1
        %s217 = scalar_select %p216, %s21, 1
        %p218 = scmp.lt.s32.totalorder %s215, 2
        %s219 = scalar_select %p218, %s215, 2
        %s220 = smul.addr %s217, 3
        %s221 = sadd.s32 %s219, %s220
        %s222 = smul.addr %s221, 8
        %s223 = scalar_lea.vmem %s0, %s222
        %s224 = smul.u32 3, %s22
        %p225 = scmp.lt.s32.totalorder %s21, 1
        %s226 = scalar_select %p225, %s21, 1
        %s227 = smul.addr %s226, 3
        %s228 = smul.addr %s227, 8
        %s229 = scalar_lea.vmem %s1, %s228
        %p230 = scmp.lt.s32.totalorder %s21, 1
        %s231 = scalar_select %p230, %s21, 1
        %s232 = scalar_lea.vmem %s2, %s231
        %s233 = smul.u32 3, %s22
        %v234 = vld [vmem:[%s223] sm:$0xff]
        %v235 = vld [vmem:[%s223 + $0x8] sm:$0xff]
        %v236 = vld [vmem:[%s223 + $0x10] sm:$0xff]
        %v237 = vld [vmem:[%s229] sm:$0xff]
        %v238 = vld [vmem:[%s229 + $0x8] sm:$0xff]
        %v239 = vld [vmem:[%s229 + $0x10] sm:$0xf]
        %v240 = vld [vmem:[%s232] sm:$0x1]
        %v242 = vperm.slane %v240, 0
        %vm244 = vcmask 162816
        %v246 = vsel %vm244, %v234, 0
        %v249 = vsel %vm244, %v235, 0
        %v252 = vsel %vm244, %v236, 0
        %vm254 = vcmask 1043456
        %v256 = vsel %vm254, %v239, 0
        %258 = vmatpush.msra.mxu0 0.0
        %259 = vmatpush.msra.mxu0 0.0
        %260 = vmatpush.msra.mxu0 0.0
        %261 = vmatpush.msra.mxu0 0.0
        %262 = vmatpush.msra.mxu0 0.0
        %263 = vmatpush.msra.mxu0 0.0
        %264 = vmatpush.msra.mxu0 0.0
        %265 = vmatpush.msra.mxu0 0.0
        %266 = vmatpush.msra.mxu0 0.0
        %267 = vmatpush.msra.mxu0 0.0
        %268 = vmatpush.msra.mxu0 0.0
        %269 = vmatpush.msra.mxu0 0.0
        %270 = vmatpush.msra.mxu0 0.0
        %271 = vmatpush.msra.mxu0 %v256
        %272 = vmatpush.msra.mxu0 %v238
        %273 = vmatpush.msra.mxu0 %v237
        %274 = vmatmul.f32.gmra.mxu0 %v246
        %v275 = vpop.f32.mrf.mxu0
        %v276 = vadd.f32 %v242, %v275
        %277 = vmatmul.f32.gmra.mxu0 %v249
        %v278 = vpop.f32.mrf.mxu0
        %v279 = vadd.f32 %v242, %v278
        %280 = vmatmul.f32.gmra.mxu0 %v252
        %v281 = vpop.f32.mrf.mxu0
        %v282 = vadd.f32 %v242, %v281
        %283 = vdwg.mxu0
        %vm284 = vcmask 261120
        %285 = vst.msk [vmem:[%s214] sm:$0xff] %vm284, %v276
        %286 = vst.msk [vmem:[%s214 + $0x8] sm:$0xff] %vm284, %v279
        %287 = vst.msk [vmem:[%s214 + $0x10] sm:$0xff] %vm284, %v282
        %s288 = sand.u32 %s119, 1
        %s289 = scalar_lea.sflag [#allocation3], %s288
        %s290 = sand.u32 %s119, 1
        %s291 = smul.addr %s290, 24
        %s292 = scalar_lea.vmem [#allocation2], %s291
        // Predicated region
        $region33: #{tpu_custom_call.1} parent=31 // pred_check
          %p293 = pneg %p129
        $region34: #{tpu_custom_call.1} parent=31 // pred_check_branch
          %295 = sbr.rel (%p293) target = $region36
        $region35: #{tpu_custom_call.1} parent=31 // pred_region
          %s296 = smul.u32 3, %s22
          %298 = vsyncadd %s289, 0
          %s299 = smul.addr %s21, 3
          %s300 = sadd.s32 %s296, %s299
          %s301 = smul.addr %s300, 8
          %s302 = scalar_lea.hbm %s3, %s301
          %s303 = sshll.u32 %s292, 4
          %s304 = int_to_ptr.vmem [resolvable:$true] %s303
          %s305 = sshll.u32 %s302, 4
          %s306 = int_to_ptr.hbm [resolvable:$true] %s305
          %311 = dma.vmem_to_hbm [thread:$0]  %s304, 384, %s306, %s289, 128, 128, 8
        $region36: #{tpu_custom_call.1} parent=31 // pred_fallthru
          _
      $region32: #{tpu_custom_call.1} parent=5 // pred_fallthru
        _
      %p312 = scmp.le.s32.totalorder 2, %s12
      // Predicated region
      $region37: #{tpu_custom_call.1} parent=5 // pred_check
        %p313 = pneg %p312
      $region38: #{tpu_custom_call.1} parent=5 // pred_check_branch
        %315 = sbr.rel (%p313) target = $region40
      $region39: #{tpu_custom_call.1} parent=5 // pred_region
        %s316 = ssub.s32 %s12, 2
        // Predicated region
        $region41: #{tpu_custom_call.1} parent=39 // pred_check
          %p317 = pneg %p135
        $region42: #{tpu_custom_call.1} parent=39 // pred_check_branch
          %319 = sbr.rel (%p317) target = $region44
        $region43: #{tpu_custom_call.1} parent=39 // pred_region
          %s320 = sand.u32 %s120, 1
          %s321 = scalar_lea.sflag [#allocation3], %s320
          %s322 = sand.u32 %s120, 1
          %s323 = smul.addr %s322, 24
          %s324 = scalar_lea.vmem [#allocation2], %s323
          %326 = dma.done %s321, 384
        $region44: #{tpu_custom_call.1} parent=39 // pred_fallthru
          _
      $region40: #{tpu_custom_call.1} parent=5 // pred_fallthru
        _
    $region6: #{tpu_custom_call.1} parent=1 // loop_footer
      %s16 = sadd.s32 1, %s12
    $region7: #{tpu_custom_call.1} parent=1 // loop_footer_branch
      %11 = sbr.rel target = $region3
    $region8: #{tpu_custom_call.1} parent=1 // loop_exit
      _
    %327 = vsyncpa [#allocation3], 1
    %s328 = scalar_lea.sflag [#allocation3], 1
    %329 = vsyncpa %s328, 1

</llo_original>
